<compile_context>
chip_gen: v6e
topology: v6e:2x2x1
jax: 0.10.0
libtpu: 0.0.40
codegen_flags: <defaults>
</compile_context>

<pallas_src>
import functools

import jax
import jax.numpy as jnp
from jax.experimental import pallas as pl
from jax.experimental.pallas import tpu as pltpu


def _round_up(x, m):
    return ((x + m - 1) // m) * m


# ----------------------------------------------------------------------------
# Fused Pallas kernel: whole MLP in lane-dense (feature, batch) layout.
# ----------------------------------------------------------------------------
def _fused_decoder_kernel(*refs, n_layers, cond_mode, num_labels, use_bf16):
    """refs = [z_t (latent, bt)]
              + ([c_blk, w_cT] if conditional)
              + [w0T, b0, w1T, b1, ...]
              + [out (d_out, bt)]
    cond_mode: 0 = unconditional, 1 = int labels (one-hot built in-kernel),
               2 = float label features."""
    mm = (lambda a: a.astype(jnp.bfloat16)) if use_bf16 else (lambda a: a)

    pos = 0
    x = refs[pos][...].astype(jnp.float32)            # (latent, bt)
    pos += 1

    c_contrib = None
    if cond_mode != 0:
        c_blk = refs[pos][...]                        # (1, bt) int32  or (num_labels, bt) f32
        w_cT = refs[pos + 1][...]                     # (D0, num_labels)
        pos += 2
        bt = c_blk.shape[-1]
        if cond_mode == 1:
            lbl = jax.lax.broadcasted_iota(jnp.int32, (num_labels, bt), 0)
            c_feat = (lbl == c_blk).astype(jnp.float32)     # in-kernel one-hot
        else:
            c_feat = c_blk.astype(jnp.float32)
        c_contrib = jnp.dot(mm(w_cT), mm(c_feat),
                            preferred_element_type=jnp.float32)   # (D0, bt)

    o_ref = refs[-1]

    for layer in range(n_layers):
        wT = refs[pos][...]                           # (Dout, Din)
        b = refs[pos + 1][...]                        # (Dout, 1)
        pos += 2
        y = jnp.dot(mm(wT), mm(x), preferred_element_type=jnp.float32) + b
        if layer == 0 and c_contrib is not None:
            y = y + c_contrib                         # == one-hot(c) @ W_c  (or c @ W_c)
        if layer + 1 < n_layers:
            x = jnp.maximum(y, 0.0)                   # ReLU
        else:
            # sigmoid: exp on EUP + exact reciprocal (matches reference at 1e-5)
            x = pl.reciprocal(1.0 + jnp.exp(-y), approx=False)

    o_ref[...] = x.astype(o_ref.dtype)


# ----------------------------------------------------------------------------
# One-time parameter preprocessing (hoisted out of the per-call path)
# ----------------------------------------------------------------------------
def prepare_decoder_params(params, latent_size, conditional, num_labels=10):
    """params: list of (W_i, b_i) with W_i stored (in_features, out_features).
    Splits the first-layer weight into latent / label parts and stores all
    weights transposed (Dout, Din) for the lane-dense kernel layout."""
    w0, _ = params[0]
    if conditional:
        assert w0.shape[0] == latent_size + num_labels
        w_z, w_c = w0[:latent_size], w0[latent_size:]
        w_cT = jnp.asarray(w_c).T                     # (D0, num_labels)
    else:
        w_z, w_cT = w0, None
    weightsT = [jnp.asarray(w_z).T] + [jnp.asarray(w).T for (w, _) in params[1:]]
    biases = [jnp.asarray(b).reshape(-1, 1) for (_, b) in params]
    return {"w_cT": w_cT, "layers": list(zip(weightsT, biases))}


# ----------------------------------------------------------------------------
# Decoder forward (mirrors the PyTorch module semantics)
# ----------------------------------------------------------------------------
def decoder_forward(prepared, z, c, *, conditional, onehot, num_labels=10,
                    batch_tile=1024, use_bf16_matmul=False):
    B, latent = z.shape
    layers = prepared["layers"]
    n_layers = len(layers)
    d_out = layers[-1][0].shape[0]
    dtype = z.dtype

    # Lane-dense layout: batch on the 128-lane axis.
    # TODO(synk): have the upstream producer emit z already as (latent, B) to
    # avoid this one wrapper transpose copy.
    z_t = jnp.asarray(z).T                            # (latent, B)

    inputs = [z_t]
    c_rows = 0
    cond_mode = 0
    if conditional:
        if onehot:
            cond_mode, c_rows = 1, 1
            c_blk = jnp.asarray(c).reshape(1, -1).astype(jnp.int32)   # (1, B)
        else:
            cond_mode, c_rows = 2, num_labels
            c_blk = jnp.asarray(c).T.astype(jnp.float32)              # (num_labels, B)
        inputs += [c_blk, prepared["w_cT"]]
    for wT, b in layers:
        inputs += [wT, b]

    # Batch tile: single full block for small B; otherwise a big multiple of
    # 128, capped so large B yields >= 2 parallel grid steps (v7x has 2 TCs).
    if B <= 128:
        bt = B
    else:
        bt = min(_round_up(batch_tile, 128), _round_up(B, 128))
        bt = min(bt, max(128, _round_up(pl.cdiv(B, 2), 128)))
    grid = (pl.cdiv(B, bt),)

    # VMEM budget: single-buffered weights + double-buffered I/O blocks + slack.
    w_bytes = sum(w.size + b.size for w, b in layers) * 4
    if conditional:
        w_bytes += prepared["w_cT"].size * 4
    io_bytes = (latent + c_rows + d_out) * bt * 4 * 2
    widest = max([latent, c_rows, d_out] + [w.shape[0] for w, _ in layers])
    act_bytes = widest * bt * 4 * 4
    vmem_limit = int(min(max(2 * (w_bytes + io_bytes + act_bytes), 4 << 20), 32 << 20))

    kernel = functools.partial(_fused_decoder_kernel, n_layers=n_layers,
                               cond_mode=cond_mode, num_labels=num_labels,
                               use_bf16=use_bf16_matmul)

    def _make_in_specs(single_buffer_weights):
        def rep(shape):  # grid-invariant (replicated) input
            idx = lambda i: (0,) * len(shape)
            if single_buffer_weights:
                return pl.BlockSpec(shape, idx, pipeline_mode=pl.Buffered(1))
            return pl.BlockSpec(shape, idx)

        specs = [pl.BlockSpec((latent, bt), lambda i: (0, i))]
        if conditional:
            specs.append(pl.BlockSpec((c_rows, bt), lambda i: (0, i)))
            specs.append(rep(prepared["w_cT"].shape))
        for wT, b in layers:
            specs.append(rep(wT.shape))
            specs.append(rep(b.shape))
        return specs

    def _run(single_buffer_weights):
        return pl.pallas_call(
            kernel,
            out_shape=jax.ShapeDtypeStruct((d_out, B), dtype),
            grid=grid,
            in_specs=_make_in_specs(single_buffer_weights),
            out_specs=pl.BlockSpec((d_out, bt), lambda i: (0, i)),
            compiler_params=pltpu.CompilerParams(
                dimension_semantics=("parallel",),
                vmem_limit_bytes=vmem_limit),
        )(*inputs)

    try:
        out_t = _run(True)      # single-buffer grid-invariant weights (halves their VMEM)
    except Exception:           # fallback if pl.Buffered(1) is unsupported in this build
        out_t = _run(False)

    return out_t.T                                     # (B, d_out)


# ----------------------------------------------------------------------------
# Parameter init (matches nn.Linear shapes; weight stored (in, out))
# ----------------------------------------------------------------------------
def init_decoder_params(key, layer_sizes, latent_size, conditional, num_labels=10):
    input_size = latent_size + num_labels if conditional else latent_size
    in_sizes = [input_size] + list(layer_sizes[:-1])
    out_sizes = list(layer_sizes)
    params = []
    for in_size, out_size in zip(in_sizes, out_sizes):
        key, kw, kb = jax.random.split(key, 3)
        bound = 1.0 / jnp.sqrt(in_size)
        w = jax.random.uniform(kw, (in_size, out_size), jnp.float32, -bound, bound)
        b = jax.random.uniform(kb, (out_size,), jnp.float32, -bound, bound)
        params.append((w, b))
    return params


# ----------------------------------------------------------------------------
# Pure-JAX reference (original concat / one-hot semantics) for correctness
# ----------------------------------------------------------------------------
def idx2onehot(idx, n):
    idx = idx.reshape(-1)
    return jax.nn.one_hot(idx, n, dtype=jnp.float32)


def decoder_forward_ref(params, z, c, *, conditional, onehot, num_labels=10):
    if conditional:
        if onehot:
            c = idx2onehot(c, n=num_labels)
        z = jnp.concatenate([z, c.astype(z.dtype)], axis=-1)
    x = z
    n_layers = len(params)
    for i, (w, b) in enumerate(params):
        x = x @ w + b
        if i + 1 < n_layers:
            x = jnp.maximum(x, 0.0)
        else:
            x = jax.nn.sigmoid(x)
    return x


if __name__ == "__main__":
    num_labels = 10
    latent_size = 12
    layer_sizes = [32, 24]        # hidden -> output

    key = jax.random.PRNGKey(0)
    kp, kp2, kz, kc = jax.random.split(key, 4)

    # Conditional decoder with integer labels (one-hot built in-kernel).
    params_c = init_decoder_params(kp, layer_sizes, latent_size,
                                   conditional=True, num_labels=num_labels)
    prep_c = prepare_decoder_params(params_c, latent_size, conditional=True,
                                    num_labels=num_labels)
    for batch in (16, 13, 200):   # aligned, tiny ragged, multi-tile ragged
        kz_b, kc_b = jax.random.split(jax.random.fold_in(kz, batch))
        z = jax.random.normal(kz_b, (batch, latent_size), dtype=jnp.float32)
        c = jax.random.randint(kc_b, (batch,), 0, num_labels, dtype=jnp.int32)

        out = decoder_forward(prep_c, z, c, conditional=True, onehot=True,
                              num_labels=num_labels)
        out = jax.block_until_ready(out)
        ref = decoder_forward_ref(params_c, z, c, conditional=True, onehot=True,
                                  num_labels=num_labels)
        assert out.shape == (batch, layer_sizes[-1])
        assert jnp.allclose(out, ref, atol=1e-5, rtol=1e-5), \
            f"conditional(onehot) mismatch (batch={batch})"

    # Conditional decoder with pre-featurized float labels (onehot=False path).
    kz_f, kc_f = jax.random.split(jax.random.fold_in(kz, 999))
    z = jax.random.normal(kz_f, (16, latent_size), dtype=jnp.float32)
    c_feat = jax.random.uniform(kc_f, (16, num_labels), dtype=jnp.float32)
    out = decoder_forward(prep_c, z, c_feat, conditional=True, onehot=False,
                          num_labels=num_labels)
    out = jax.block_until_ready(out)
    ref = decoder_forward_ref(params_c, z, c_feat, conditional=True, onehot=False,
                              num_labels=num_labels)
    assert jnp.allclose(out, ref, atol=1e-5, rtol=1e-5), "conditional(float) mismatch"

    # Non-conditional path.
    params_u = init_decoder_params(kp2, layer_sizes, latent_size,
                                   conditional=False, num_labels=num_labels)
    prep_u = prepare_decoder_params(params_u, latent_size, conditional=False,
                                    num_labels=num_labels)
    z = jax.random.normal(kc, (16, latent_size), dtype=jnp.float32)
    out = decoder_forward(prep_u, z, None, conditional=False, onehot=False,
                          num_labels=num_labels)
    out = jax.block_until_ready(out)
    ref = decoder_forward_ref(params_u, z, None, conditional=False, onehot=False,
                              num_labels=num_labels)
    assert out.shape == (16, layer_sizes[-1])
    assert jnp.allclose(out, ref, atol=1e-5, rtol=1e-5), "unconditional mismatch"

    print("KERNEL_OK")
</pallas_src>

<mosaic_0001>
module attributes {stable_mosaic.version = 11 : i64} {
  func.func @_fused_decoder_kernel(%arg0: i32, %arg1: memref<12x16xf32, #tpu.memory_space<vmem>>, %arg2: memref<1x16xi32, #tpu.memory_space<vmem>>, %arg3: memref<32x10xf32, #tpu.memory_space<vmem>>, %arg4: memref<32x12xf32, #tpu.memory_space<vmem>>, %arg5: memref<32x1xf32, #tpu.memory_space<vmem>>, %arg6: memref<24x32xf32, #tpu.memory_space<vmem>>, %arg7: memref<24x1xf32, #tpu.memory_space<vmem>>, %arg8: memref<24x16xf32, #tpu.memory_space<vmem>>) attributes {dimension_semantics = [#tpu.dimension_semantics<parallel>], iteration_bounds = array<i64: 1>, scalar_prefetch = 0 : i64, scratch_operands = 0 : i64, tpu.core_type = #tpu.core_type<tc>, window_params = [{transform_indices = @transform_0, window_bounds = array<i64: 12, 16>}, {transform_indices = @transform_1, window_bounds = array<i64: 1, 16>}, {pipeline_mode = #tpu.pipeline_mode<synchronous>, transform_indices = @transform_2, window_bounds = array<i64: 32, 10>}, {pipeline_mode = #tpu.pipeline_mode<synchronous>, transform_indices = @transform_3, window_bounds = array<i64: 32, 12>}, {pipeline_mode = #tpu.pipeline_mode<synchronous>, transform_indices = @transform_4, window_bounds = array<i64: 32, 1>}, {pipeline_mode = #tpu.pipeline_mode<synchronous>, transform_indices = @transform_5, window_bounds = array<i64: 24, 32>}, {pipeline_mode = #tpu.pipeline_mode<synchronous>, transform_indices = @transform_6, window_bounds = array<i64: 24, 1>}, {transform_indices = @transform_7, window_bounds = array<i64: 24, 16>}]} {
    %c0 = arith.constant 0 : index
    %c0_0 = arith.constant 0 : index
    %0 = vector.load %arg1[%c0, %c0_0] : memref<12x16xf32, #tpu.memory_space<vmem>>, vector<12x16xf32>
    %c0_1 = arith.constant 0 : index
    %c0_2 = arith.constant 0 : index
    %1 = vector.load %arg2[%c0_1, %c0_2] : memref<1x16xi32, #tpu.memory_space<vmem>>, vector<1x16xi32>
    %c0_3 = arith.constant 0 : index
    %c0_4 = arith.constant 0 : index
    %2 = vector.load %arg3[%c0_3, %c0_4] : memref<32x10xf32, #tpu.memory_space<vmem>>, vector<32x10xf32>
    %3 = tpu.iota {dimensions = array<i32: 0>} : vector<10x16xi32>
    %4 = vector.broadcast %1 : vector<1x16xi32> to vector<10x16xi32>
    %5 = arith.cmpi eq, %3, %4 : vector<10x16xi32>
    %6 = arith.extui %5 : vector<10x16xi1> to vector<10x16xi32>
    %7 = arith.sitofp %6 : vector<10x16xi32> to vector<10x16xf32>
    %cst = arith.constant dense<0.000000e+00> : vector<32x16xf32>
    %8 = tpu.matmul %2, %7, %cst {dimension_numbers = #tpu.dot_dimension_numbers<[1], [0], [0], [1], [0, 0, 1, 1], [], []>} : vector<32x10xf32>, vector<10x16xf32>, vector<32x16xf32> -> vector<32x16xf32>
    %c0_5 = arith.constant 0 : index
    %c0_6 = arith.constant 0 : index
    %9 = vector.load %arg4[%c0_5, %c0_6] : memref<32x12xf32, #tpu.memory_space<vmem>>, vector<32x12xf32>
    %c0_7 = arith.constant 0 : index
    %c0_8 = arith.constant 0 : index
    %10 = vector.load %arg5[%c0_7, %c0_8] : memref<32x1xf32, #tpu.memory_space<vmem>>, vector<32x1xf32>
    %cst_9 = arith.constant dense<0.000000e+00> : vector<32x16xf32>
    %11 = tpu.matmul %9, %0, %cst_9 {dimension_numbers = #tpu.dot_dimension_numbers<[1], [0], [0], [1], [0, 0, 1, 1], [], []>} : vector<32x12xf32>, vector<12x16xf32>, vector<32x16xf32> -> vector<32x16xf32>
    %12 = vector.broadcast %10 : vector<32x1xf32> to vector<32x16xf32>
    %13 = arith.addf %11, %12 : vector<32x16xf32>
    %14 = arith.addf %13, %8 : vector<32x16xf32>
    %cst_10 = arith.constant 0.000000e+00 : f32
    %15 = vector.broadcast %cst_10 : f32 to vector<32x16xf32>
    %16 = arith.maximumf %14, %15 : vector<32x16xf32>
    %c0_11 = arith.constant 0 : index
    %c0_12 = arith.constant 0 : index
    %17 = vector.load %arg6[%c0_11, %c0_12] : memref<24x32xf32, #tpu.memory_space<vmem>>, vector<24x32xf32>
    %c0_13 = arith.constant 0 : index
    %c0_14 = arith.constant 0 : index
    %18 = vector.load %arg7[%c0_13, %c0_14] : memref<24x1xf32, #tpu.memory_space<vmem>>, vector<24x1xf32>
    %cst_15 = arith.constant dense<0.000000e+00> : vector<24x16xf32>
    %19 = tpu.matmul %17, %16, %cst_15 {dimension_numbers = #tpu.dot_dimension_numbers<[1], [0], [0], [1], [0, 0, 1, 1], [], []>} : vector<24x32xf32>, vector<32x16xf32>, vector<24x16xf32> -> vector<24x16xf32>
    %20 = vector.broadcast %18 : vector<24x1xf32> to vector<24x16xf32>
    %21 = arith.addf %19, %20 : vector<24x16xf32>
    %cst_16 = arith.constant 0.000000e+00 : f32
    %22 = vector.broadcast %cst_16 : f32 to vector<24x16xf32>
    %23 = arith.subf %22, %21 : vector<24x16xf32>
    %24 = math.exp %23 : vector<24x16xf32>
    %cst_17 = arith.constant 1.000000e+00 : f32
    %25 = vector.broadcast %cst_17 : f32 to vector<24x16xf32>
    %26 = arith.addf %25, %24 : vector<24x16xf32>
    %27 = tpu.reciprocal %26 : vector<24x16xf32> -> vector<24x16xf32>
    %c0_18 = arith.constant 0 : index
    %c0_19 = arith.constant 0 : index
    %28 = vector.load %arg8[%c0_18, %c0_19] : memref<24x16xf32, #tpu.memory_space<vmem>>, vector<24x16xf32>
    tpu.vector_store %arg8[%c0_18, %c0_19], %27 {strides = array<i32>} : memref<24x16xf32, #tpu.memory_space<vmem>>, vector<24x16xf32>,
    return
  }
  func.func @transform_0(%arg0: i32) -> (i32, i32) {
    %c0_i32 = arith.constant 0 : i32
    %c0_i32_0 = arith.constant 0 : i32
    return %c0_i32, %arg0 : i32, i32
  }
  func.func @transform_1(%arg0: i32) -> (i32, i32) {
    %c0_i32 = arith.constant 0 : i32
    %c0_i32_0 = arith.constant 0 : i32
    return %c0_i32, %arg0 : i32, i32
  }
  func.func @transform_2(%arg0: i32) -> (i32, i32) {
    %c0_i32 = arith.constant 0 : i32
    %c0_i32_0 = arith.constant 0 : i32
    %c0_i32_1 = arith.constant 0 : i32
    return %c0_i32, %c0_i32_0 : i32, i32
  }
  func.func @transform_3(%arg0: i32) -> (i32, i32) {
    %c0_i32 = arith.constant 0 : i32
    %c0_i32_0 = arith.constant 0 : i32
    %c0_i32_1 = arith.constant 0 : i32
    return %c0_i32, %c0_i32_0 : i32, i32
  }
  func.func @transform_4(%arg0: i32) -> (i32, i32) {
    %c0_i32 = arith.constant 0 : i32
    %c0_i32_0 = arith.constant 0 : i32
    %c0_i32_1 = arith.constant 0 : i32
    return %c0_i32, %c0_i32_0 : i32, i32
  }
  func.func @transform_5(%arg0: i32) -> (i32, i32) {
    %c0_i32 = arith.constant 0 : i32
    %c0_i32_0 = arith.constant 0 : i32
    %c0_i32_1 = arith.constant 0 : i32
    return %c0_i32, %c0_i32_0 : i32, i32
  }
  func.func @transform_6(%arg0: i32) -> (i32, i32) {
    %c0_i32 = arith.constant 0 : i32
    %c0_i32_0 = arith.constant 0 : i32
    %c0_i32_1 = arith.constant 0 : i32
    return %c0_i32, %c0_i32_0 : i32, i32
  }
  func.func @transform_7(%arg0: i32) -> (i32, i32) {
    %c0_i32 = arith.constant 0 : i32
    %c0_i32_0 = arith.constant 0 : i32
    return %c0_i32, %arg0 : i32, i32
  }
}

module attributes {stable_mosaic.version = 11 : i64} {
  func.func @_fused_decoder_kernel(%arg0: i32, %arg1: memref<12x16xf32, #tpu.memory_space<vmem>>, %arg2: memref<1x16xi32, #tpu.memory_space<vmem>>, %arg3: memref<32x10xf32, #tpu.memory_space<vmem>>, %arg4: memref<32x12xf32, #tpu.memory_space<vmem>>, %arg5: memref<32x1xf32, #tpu.memory_space<vmem>>, %arg6: memref<24x32xf32, #tpu.memory_space<vmem>>, %arg7: memref<24x1xf32, #tpu.memory_space<vmem>>, %arg8: memref<24x16xf32, #tpu.memory_space<vmem>>) attributes {dimension_semantics = [#tpu.dimension_semantics<parallel>], iteration_bounds = array<i64: 1>, scalar_prefetch = 0 : i64, scratch_operands = 0 : i64, tpu.core_type = #tpu.core_type<tc>, window_params = [{transform_indices = @transform_0, window_bounds = array<i64: 12, 16>}, {transform_indices = @transform_1, window_bounds = array<i64: 1, 16>}, {pipeline_mode = #tpu.pipeline_mode<synchronous>, transform_indices = @transform_2, window_bounds = array<i64: 32, 10>}, {pipeline_mode = #tpu.pipeline_mode<synchronous>, transform_indices = @transform_3, window_bounds = array<i64: 32, 12>}, {pipeline_mode = #tpu.pipeline_mode<synchronous>, transform_indices = @transform_4, window_bounds = array<i64: 32, 1>}, {pipeline_mode = #tpu.pipeline_mode<synchronous>, transform_indices = @transform_5, window_bounds = array<i64: 24, 32>}, {pipeline_mode = #tpu.pipeline_mode<synchronous>, transform_indices = @transform_6, window_bounds = array<i64: 24, 1>}, {transform_indices = @transform_7, window_bounds = array<i64: 24, 16>}]} {
    %c0 = arith.constant 0 : index
    %c0_0 = arith.constant 0 : index
    %0 = vector.load %arg1[%c0, %c0_0] : memref<12x16xf32, #tpu.memory_space<vmem>>, vector<12x16xf32>
    %c0_1 = arith.constant 0 : index
    %c0_2 = arith.constant 0 : index
    %1 = vector.load %arg2[%c0_1, %c0_2] : memref<1x16xi32, #tpu.memory_space<vmem>>, vector<1x16xi32>
    %c0_3 = arith.constant 0 : index
    %c0_4 = arith.constant 0 : index
    %2 = vector.load %arg3[%c0_3, %c0_4] : memref<32x10xf32, #tpu.memory_space<vmem>>, vector<32x10xf32>
    %3 = tpu.iota {dimensions = array<i32: 0>} : vector<10x16xi32>
    %4 = vector.broadcast %1 : vector<1x16xi32> to vector<10x16xi32>
    %5 = arith.cmpi eq, %3, %4 : vector<10x16xi32>
    %6 = arith.extui %5 : vector<10x16xi1> to vector<10x16xi32>
    %7 = arith.sitofp %6 : vector<10x16xi32> to vector<10x16xf32>
    %cst = arith.constant dense<0.000000e+00> : vector<32x16xf32>
    %8 = tpu.matmul %2, %7, %cst {dimension_numbers = #tpu.dot_dimension_numbers<[1], [0], [0], [1], [0, 0, 1, 1], [], []>} : vector<32x10xf32>, vector<10x16xf32>, vector<32x16xf32> -> vector<32x16xf32>
    %c0_5 = arith.constant 0 : index
    %c0_6 = arith.constant 0 : index
    %9 = vector.load %arg4[%c0_5, %c0_6] : memref<32x12xf32, #tpu.memory_space<vmem>>, vector<32x12xf32>
    %c0_7 = arith.constant 0 : index
    %c0_8 = arith.constant 0 : index
    %10 = vector.load %arg5[%c0_7, %c0_8] : memref<32x1xf32, #tpu.memory_space<vmem>>, vector<32x1xf32>
    %cst_9 = arith.constant dense<0.000000e+00> : vector<32x16xf32>
    %11 = tpu.matmul %9, %0, %cst_9 {dimension_numbers = #tpu.dot_dimension_numbers<[1], [0], [0], [1], [0, 0, 1, 1], [], []>} : vector<32x12xf32>, vector<12x16xf32>, vector<32x16xf32> -> vector<32x16xf32>
    %12 = vector.broadcast %10 : vector<32x1xf32> to vector<32x16xf32>
    %13 = arith.addf %11, %12 : vector<32x16xf32>
    %14 = arith.addf %13, %8 : vector<32x16xf32>
    %cst_10 = arith.constant 0.000000e+00 : f32
    %15 = vector.broadcast %cst_10 : f32 to vector<32x16xf32>
    %16 = arith.maximumf %14, %15 : vector<32x16xf32>
    %c0_11 = arith.constant 0 : index
    %c0_12 = arith.constant 0 : index
    %17 = vector.load %arg6[%c0_11, %c0_12] : memref<24x32xf32, #tpu.memory_space<vmem>>, vector<24x32xf32>
    %c0_13 = arith.constant 0 : index
    %c0_14 = arith.constant 0 : index
    %18 = vector.load %arg7[%c0_13, %c0_14] : memref<24x1xf32, #tpu.memory_space<vmem>>, vector<24x1xf32>
    %cst_15 = arith.constant dense<0.000000e+00> : vector<24x16xf32>
    %19 = tpu.matmul %17, %16, %cst_15 {dimension_numbers = #tpu.dot_dimension_numbers<[1], [0], [0], [1], [0, 0, 1, 1], [], []>} : vector<24x32xf32>, vector<32x16xf32>, vector<24x16xf32> -> vector<24x16xf32>
    %20 = vector.broadcast %18 : vector<24x1xf32> to vector<24x16xf32>
    %21 = arith.addf %19, %20 : vector<24x16xf32>
    %cst_16 = arith.constant 0.000000e+00 : f32
    %22 = vector.broadcast %cst_16 : f32 to vector<24x16xf32>
    %23 = arith.subf %22, %21 : vector<24x16xf32>
    %24 = math.exp %23 : vector<24x16xf32>
    %cst_17 = arith.constant 1.000000e+00 : f32
    %25 = vector.broadcast %cst_17 : f32 to vector<24x16xf32>
    %26 = arith.addf %25, %24 : vector<24x16xf32>
    %27 = tpu.reciprocal %26 : vector<24x16xf32> -> vector<24x16xf32>
    %c0_18 = arith.constant 0 : index
    %c0_19 = arith.constant 0 : index
    %28 = vector.load %arg8[%c0_18, %c0_19] : memref<24x16xf32, #tpu.memory_space<vmem>>, vector<24x16xf32>
    tpu.vector_store %arg8[%c0_18, %c0_19], %27 {strides = array<i32>} : memref<24x16xf32, #tpu.memory_space<vmem>>, vector<24x16xf32>,
    return
  }
  func.func @transform_0(%arg0: i32) -> (i32, i32) {
    %c0_i32 = arith.constant 0 : i32
    %c0_i32_0 = arith.constant 0 : i32
    return %c0_i32, %arg0 : i32, i32
  }
  func.func @transform_1(%arg0: i32) -> (i32, i32) {
    %c0_i32 = arith.constant 0 : i32
    %c0_i32_0 = arith.constant 0 : i32
    return %c0_i32, %arg0 : i32, i32
  }
  func.func @transform_2(%arg0: i32) -> (i32, i32) {
    %c0_i32 = arith.constant 0 : i32
    %c0_i32_0 = arith.constant 0 : i32
    %c0_i32_1 = arith.constant 0 : i32
    return %c0_i32, %c0_i32_0 : i32, i32
  }
  func.func @transform_3(%arg0: i32) -> (i32, i32) {
    %c0_i32 = arith.constant 0 : i32
    %c0_i32_0 = arith.constant 0 : i32
    %c0_i32_1 = arith.constant 0 : i32
    return %c0_i32, %c0_i32_0 : i32, i32
  }
  func.func @transform_4(%arg0: i32) -> (i32, i32) {
    %c0_i32 = arith.constant 0 : i32
    %c0_i32_0 = arith.constant 0 : i32
    %c0_i32_1 = arith.constant 0 : i32
    return %c0_i32, %c0_i32_0 : i32, i32
  }
  func.func @transform_5(%arg0: i32) -> (i32, i32) {
    %c0_i32 = arith.constant 0 : i32
    %c0_i32_0 = arith.constant 0 : i32
    %c0_i32_1 = arith.constant 0 : i32
    return %c0_i32, %c0_i32_0 : i32, i32
  }
  func.func @transform_6(%arg0: i32) -> (i32, i32) {
    %c0_i32 = arith.constant 0 : i32
    %c0_i32_0 = arith.constant 0 : i32
    %c0_i32_1 = arith.constant 0 : i32
    return %c0_i32, %c0_i32_0 : i32, i32
  }
  func.func @transform_7(%arg0: i32) -> (i32, i32) {
    %c0_i32 = arith.constant 0 : i32
    %c0_i32_0 = arith.constant 0 : i32
    return %c0_i32, %arg0 : i32, i32
  }
}

</mosaic_0001>

<llo_original>
// kernel: tpu_custom_call.1
$region0: #{tpu_custom_call.1}
  #allocation0 [shape = 'u32[]', space=smem, size = 0x4, offset = 0x4, fixed_abs, tag = 'smem constant byte address 0x4 - core index']
  #allocation1 [shape = 'u32[144,128]{1,0:T(1,128)}', space=vmem, size = 0x12000, scoped, tag = 'internal scratch']
  %s0 = inlined_call_operand.vmem [shape: f32[12,16], index: 0, kind: input, shape index: {}]
  %s1 = inlined_call_operand.vmem [shape: s32[1,16], index: 1, kind: input, shape index: {}]
  %s2 = inlined_call_operand.vmem [shape: f32[32,10], index: 2, kind: input, shape index: {}]
  %s3 = inlined_call_operand.vmem [shape: f32[32,12], index: 3, kind: input, shape index: {}]
  %s4 = inlined_call_operand.vmem [shape: f32[32,1], index: 4, kind: input, shape index: {}]
  %s5 = inlined_call_operand.vmem [shape: f32[24,32], index: 5, kind: input, shape index: {}]
  %s6 = inlined_call_operand.vmem [shape: f32[24,1], index: 6, kind: input, shape index: {}]
  %s7 = inlined_call_operand.vmem [shape: f32[24,16], index: 7, kind: output, shape index: {}]
  %s8 = sld [smem:[#allocation0]]
  $region38: #{tpu_custom_call.1} parent=0
    _
  %s10 = ssub.s32 1, %s8
  %s11 = scalar_select 0, %s10, %s8
  // Predicated region
  $region2: #{tpu_custom_call.1} parent=0 // pred_check
    _
  $region3: #{tpu_custom_call.1} parent=0 // pred_check_branch
    %13 = sbr.rel (0) target = $region5
  $region4: #{tpu_custom_call.1} parent=0 // pred_region
    _
  $region5: #{tpu_custom_call.1} parent=0 // pred_fallthru
    _
  // Predicated region
  $region6: #{tpu_custom_call.1} parent=0 // pred_check
    _
  $region7: #{tpu_custom_call.1} parent=0 // pred_check_branch
    %15 = sbr.rel (0) target = $region9
  $region8: #{tpu_custom_call.1} parent=0 // pred_region
    _
  $region9: #{tpu_custom_call.1} parent=0 // pred_fallthru
    _
  // Predicated region
  $region10: #{tpu_custom_call.1} parent=0 // pred_check
    _
  $region11: #{tpu_custom_call.1} parent=0 // pred_check_branch
    %17 = sbr.rel (0) target = $region13
  $region12: #{tpu_custom_call.1} parent=0 // pred_region
    _
  $region13: #{tpu_custom_call.1} parent=0 // pred_fallthru
    _
  // Predicated region
  $region14: #{tpu_custom_call.1} parent=0 // pred_check
    _
  $region15: #{tpu_custom_call.1} parent=0 // pred_check_branch
    %19 = sbr.rel (0) target = $region17
  $region16: #{tpu_custom_call.1} parent=0 // pred_region
    _
  $region17: #{tpu_custom_call.1} parent=0 // pred_fallthru
    _
  // Predicated region
  $region18: #{tpu_custom_call.1} parent=0 // pred_check
    _
  $region19: #{tpu_custom_call.1} parent=0 // pred_check_branch
    %21 = sbr.rel (0) target = $region21
  $region20: #{tpu_custom_call.1} parent=0 // pred_region
    _
  $region21: #{tpu_custom_call.1} parent=0 // pred_fallthru
    _
  // Predicated region
  $region22: #{tpu_custom_call.1} parent=0 // pred_check
    _
  $region23: #{tpu_custom_call.1} parent=0 // pred_check_branch
    %23 = sbr.rel (0) target = $region25
  $region24: #{tpu_custom_call.1} parent=0 // pred_region
    _
  $region25: #{tpu_custom_call.1} parent=0 // pred_fallthru
    _
  // Predicated region
  $region26: #{tpu_custom_call.1} parent=0 // pred_check
    _
  $region27: #{tpu_custom_call.1} parent=0 // pred_check_branch
    %25 = sbr.rel (0) target = $region29
  $region28: #{tpu_custom_call.1} parent=0 // pred_region
    _
  $region29: #{tpu_custom_call.1} parent=0 // pred_fallthru
    _
  %v26 = vld [vmem:[%s0] sm:$0xff]
  %v27 = vld [vmem:[%s0 + $0x8] sm:$0xf]
  %v28 = vld [vmem:[%s1] sm:$0x1]
  %v29 = vld [vmem:[%s2] sm:$0xff]
  %v30 = vld [vmem:[%s2 + $0x8] sm:$0xff]
  %v31 = vld [vmem:[%s2 + $0x10] sm:$0xff]
  %v32 = vld [vmem:[%s2 + $0x18] sm:$0xff]
  %v33 = vlaneseq
  %v34 = vshrl.u32 %v33, 7
  %v35 = vadd.s32 %v34, 8
  %v36 = vlaneseq
  %v37 = vshrl.u32 %v36, 7
  %v38 = vsub.s32 0, %v37
  %v39 = vrot.slane %v28, %v38
  %vm40 = vcmp.eq.s32.totalorder %v34, %v39
  %vm41 = vcmp.eq.s32.totalorder %v35, %v39
  %v42 = vsel %vm40, 1, 0
  %v43 = vsel %vm41, 1, 0
  %v44 = vcvt.s32.f32 %v42
  %v45 = vcvt.s32.f32 %v43
  %vm46 = vcmask 80896
  %v48 = vsel %vm46, %v29, 0
  %v51 = vsel %vm46, %v30, 0
  %v54 = vsel %vm46, %v31, 0
  %v57 = vsel %vm46, %v32, 0
  %vm59 = vcmask 1041408
  %v61 = vsel %vm59, %v45, 0
  %63 = vmatprep.subr.mxu0 0.0
  %64 = vmatpush1.msra.mxu0 0.0
  %65 = vmatprep.subr.mxu0 0.0
  %66 = vmatpush1.msra.mxu0 0.0
  %67 = vmatprep.subr.mxu0 0.0
  %68 = vmatpush1.msra.mxu0 0.0
  %69 = vmatprep.subr.mxu0 0.0
  %70 = vmatpush1.msra.mxu0 0.0
  %71 = vmatprep.subr.mxu0 0.0
  %72 = vmatpush1.msra.mxu0 0.0
  %73 = vmatprep.subr.mxu0 0.0
  %74 = vmatpush1.msra.mxu0 0.0
  %75 = vmatprep.subr.mxu0 0.0
  %76 = vmatpush1.msra.mxu0 0.0
  %77 = vmatprep.subr.mxu0 0.0
  %78 = vmatpush1.msra.mxu0 0.0
  %79 = vmatprep.subr.mxu0 0.0
  %80 = vmatpush1.msra.mxu0 0.0
  %81 = vmatprep.subr.mxu0 0.0
  %82 = vmatpush1.msra.mxu0 0.0
  %83 = vmatprep.subr.mxu0 0.0
  %84 = vmatpush1.msra.mxu0 0.0
  %85 = vmatprep.subr.mxu0 0.0
  %86 = vmatpush1.msra.mxu0 0.0
  %87 = vmatprep.subr.mxu0 0.0
  %88 = vmatpush1.msra.mxu0 0.0
  %89 = vmatprep.subr.mxu0 0.0
  %90 = vmatpush1.msra.mxu0 0.0
  %91 = vmatprep.subr.mxu0 0.0
  %92 = vmatpush1.msra.mxu0 %v61
  %93 = vmatprep.subr.mxu0 0.0
  %94 = vmatpush1.msra.mxu0 %v44
  %95 = vmatprep.subr.mxu0 0.0
  %96 = vmatpush2.msra.mxu0 0.0
  %97 = vmatprep.subr.mxu0 0.0
  %98 = vmatpush2.msra.mxu0 0.0
  %99 = vmatprep.subr.mxu0 0.0
  %100 = vmatpush2.msra.mxu0 0.0
  %101 = vmatprep.subr.mxu0 0.0
  %102 = vmatpush2.msra.mxu0 0.0
  %103 = vmatprep.subr.mxu0 0.0
  %104 = vmatpush2.msra.mxu0 0.0
  %105 = vmatprep.subr.mxu0 0.0
  %106 = vmatpush2.msra.mxu0 0.0
  %107 = vmatprep.subr.mxu0 0.0
  %108 = vmatpush2.msra.mxu0 0.0
  %109 = vmatprep.subr.mxu0 0.0
  %110 = vmatpush2.msra.mxu0 0.0
  %111 = vmatprep.subr.mxu0 0.0
  %112 = vmatpush2.msra.mxu0 0.0
  %113 = vmatprep.subr.mxu0 0.0
  %114 = vmatpush2.msra.mxu0 0.0
  %115 = vmatprep.subr.mxu0 0.0
  %116 = vmatpush2.msra.mxu0 0.0
  %117 = vmatprep.subr.mxu0 0.0
  %118 = vmatpush2.msra.mxu0 0.0
  %119 = vmatprep.subr.mxu0 0.0
  %120 = vmatpush2.msra.mxu0 0.0
  %121 = vmatprep.subr.mxu0 0.0
  %122 = vmatpush2.msra.mxu0 0.0
  %123 = vmatprep.subr.mxu0 0.0
  %124 = vmatpush2.msra.mxu0 0.0
  %125 = vmatprep.subr.mxu0 0.0
  %126 = vmatpush2.msra.mxu0 0.0
  %127 = vmatprep.mubr.f32.mxu0 0.0
  %128 = vmatmul.mubr.f32.gmra.mxu0 %v48
  %v129 = vpop.f32.mrf.mxu0
  %v130 = vadd.f32 0.0, %v129
  %v131 = vpop.f32.mrf.mxu0
  %132 = vmatprep.mubr.f32.mxu0 0.0
  %133 = vmatmul.mubr.f32.gmra.mxu0 %v51
  %v134 = vpop.f32.mrf.mxu0
  %v135 = vadd.f32 0.0, %v134
  %v136 = vpop.f32.mrf.mxu0
  %137 = vmatprep.mubr.f32.mxu0 0.0
  %138 = vmatmul.mubr.f32.gmra.mxu0 %v54
  %v139 = vpop.f32.mrf.mxu0
  %v140 = vadd.f32 0.0, %v139
  %v141 = vpop.f32.mrf.mxu0
  %142 = vmatprep.mubr.f32.mxu0 0.0
  %143 = vmatmul.mubr.f32.gmra.mxu0 %v57
  %v144 = vpop.f32.mrf.mxu0
  %v145 = vadd.f32 0.0, %v144
  %v146 = vpop.f32.mrf.mxu0
  %147 = vdwg.mxu0
  %v148 = vld [vmem:[%s3] sm:$0xff]
  %v149 = vld [vmem:[%s3 + $0x8] sm:$0xff]
  %v150 = vld [vmem:[%s3 + $0x10] sm:$0xff]
  %v151 = vld [vmem:[%s3 + $0x18] sm:$0xff]
  %v152 = vld [vmem:[%s4] sm:$0xff]
  %v153 = vld [vmem:[%s4 + $0x8] sm:$0xff]
  %v154 = vld [vmem:[%s4 + $0x10] sm:$0xff]
  %v155 = vld [vmem:[%s4 + $0x18] sm:$0xff]
  %157 = vset.pattern.permute.xlu0 0
  %158 = vperm.xlu0 %157, %v152
  %v159 = vpop.permute.xlu0 %158
  %162 = vset.pattern.permute.xlu0 0
  %163 = vperm.xlu0 %162, %v153
  %v164 = vpop.permute.xlu0 %163
  %167 = vset.pattern.permute.xlu0 0
  %168 = vperm.xlu0 %167, %v154
  %v169 = vpop.permute.xlu0 %168
  %172 = vset.pattern.permute.xlu0 0
  %173 = vperm.xlu0 %172, %v155
  %v174 = vpop.permute.xlu0 %173
  %vm176 = vcmask 97280
  %v178 = vsel %vm176, %v148, 0
  %v181 = vsel %vm176, %v149, 0
  %v184 = vsel %vm176, %v150, 0
  %v187 = vsel %vm176, %v151, 0
  %vm189 = vcmask 1043456
  %v191 = vsel %vm189, %v27, 0
  %193 = vmatprep.subr.mxu0 0.0
  %194 = vmatpush1.msra.mxu0 0.0
  %195 = vmatprep.subr.mxu0 0.0
  %196 = vmatpush1.msra.mxu0 0.0
  %197 = vmatprep.subr.mxu0 0.0
  %198 = vmatpush1.msra.mxu0 0.0
  %199 = vmatprep.subr.mxu0 0.0
  %200 = vmatpush1.msra.mxu0 0.0
  %201 = vmatprep.subr.mxu0 0.0
  %202 = vmatpush1.msra.mxu0 0.0
  %203 = vmatprep.subr.mxu0 0.0
  %204 = vmatpush1.msra.mxu0 0.0
  %205 = vmatprep.subr.mxu0 0.0
  %206 = vmatpush1.msra.mxu0 0.0
  %207 = vmatprep.subr.mxu0 0.0
  %208 = vmatpush1.msra.mxu0 0.0
  %209 = vmatprep.subr.mxu0 0.0
  %210 = vmatpush1.msra.mxu0 0.0
  %211 = vmatprep.subr.mxu0 0.0
  %212 = vmatpush1.msra.mxu0 0.0
  %213 = vmatprep.subr.mxu0 0.0
  %214 = vmatpush1.msra.mxu0 0.0
  %215 = vmatprep.subr.mxu0 0.0
  %216 = vmatpush1.msra.mxu0 0.0
  %217 = vmatprep.subr.mxu0 0.0
  %218 = vmatpush1.msra.mxu0 0.0
  %219 = vmatprep.subr.mxu0 0.0
  %220 = vmatpush1.msra.mxu0 0.0
  %221 = vmatprep.subr.mxu0 0.0
  %222 = vmatpush1.msra.mxu0 %v191
  %223 = vmatprep.subr.mxu0 0.0
  %224 = vmatpush1.msra.mxu0 %v26
  %225 = vmatprep.subr.mxu0 0.0
  %226 = vmatpush2.msra.mxu0 0.0
  %227 = vmatprep.subr.mxu0 0.0
  %228 = vmatpush2.msra.mxu0 0.0
  %229 = vmatprep.subr.mxu0 0.0
  %230 = vmatpush2.msra.mxu0 0.0
  %231 = vmatprep.subr.mxu0 0.0
  %232 = vmatpush2.msra.mxu0 0.0
  %233 = vmatprep.subr.mxu0 0.0
  %234 = vmatpush2.msra.mxu0 0.0
  %235 = vmatprep.subr.mxu0 0.0
  %236 = vmatpush2.msra.mxu0 0.0
  %237 = vmatprep.subr.mxu0 0.0
  %238 = vmatpush2.msra.mxu0 0.0
  %239 = vmatprep.subr.mxu0 0.0
  %240 = vmatpush2.msra.mxu0 0.0
  %241 = vmatprep.subr.mxu0 0.0
  %242 = vmatpush2.msra.mxu0 0.0
  %243 = vmatprep.subr.mxu0 0.0
  %244 = vmatpush2.msra.mxu0 0.0
  %245 = vmatprep.subr.mxu0 0.0
  %246 = vmatpush2.msra.mxu0 0.0
  %247 = vmatprep.subr.mxu0 0.0
  %248 = vmatpush2.msra.mxu0 0.0
  %249 = vmatprep.subr.mxu0 0.0
  %250 = vmatpush2.msra.mxu0 0.0
  %251 = vmatprep.subr.mxu0 0.0
  %252 = vmatpush2.msra.mxu0 0.0
  %253 = vmatprep.subr.mxu0 0.0
  %254 = vmatpush2.msra.mxu0 0.0
  %255 = vmatprep.subr.mxu0 0.0
  %256 = vmatpush2.msra.mxu0 0.0
  %257 = vmatprep.mubr.f32.mxu0 0.0
  %258 = vmatmul.mubr.f32.gmra.mxu0 %v178
  %v259 = vpop.f32.mrf.mxu0
  %v260 = vadd.f32 %v159, %v259
  %v261 = vpop.f32.mrf.mxu0
  %262 = vmatprep.mubr.f32.mxu0 0.0
  %263 = vmatmul.mubr.f32.gmra.mxu0 %v181
  %v264 = vpop.f32.mrf.mxu0
  %v265 = vadd.f32 %v164, %v264
  %v266 = vpop.f32.mrf.mxu0
  %267 = vmatprep.mubr.f32.mxu0 0.0
  %268 = vmatmul.mubr.f32.gmra.mxu0 %v184
  %v269 = vpop.f32.mrf.mxu0
  %v270 = vadd.f32 %v169, %v269
  %v271 = vpop.f32.mrf.mxu0
  %272 = vmatprep.mubr.f32.mxu0 0.0
  %273 = vmatmul.mubr.f32.gmra.mxu0 %v187
  %v274 = vpop.f32.mrf.mxu0
  %v275 = vadd.f32 %v174, %v274
  %v276 = vpop.f32.mrf.mxu0
  %277 = vdwg.mxu0
  %v278 = vadd.f32 %v260, %v130
  %v279 = vadd.f32 %v265, %v135
  %v280 = vadd.f32 %v270, %v140
  %v281 = vadd.f32 %v275, %v145
  %v282 = vmax.f32 %v278, 0.0
  %v283 = vmax.f32 %v279, 0.0
  %v284 = vmax.f32 %v280, 0.0
  %v285 = vmax.f32 %v281, 0.0
  %v286 = vld [vmem:[%s5] sm:$0xff]
  %v287 = vld [vmem:[%s5 + $0x8] sm:$0xff]
  %v288 = vld [vmem:[%s5 + $0x10] sm:$0xff]
  %v289 = vld [vmem:[%s6] sm:$0xff]
  %v290 = vld [vmem:[%s6 + $0x8] sm:$0xff]
  %v291 = vld [vmem:[%s6 + $0x10] sm:$0xff]
  %293 = vset.pattern.permute.xlu0 0
  %294 = vperm.xlu0 %293, %v289
  %v295 = vpop.permute.xlu0 %294
  %298 = vset.pattern.permute.xlu0 0
  %299 = vperm.xlu0 %298, %v290
  %v300 = vpop.permute.xlu0 %299
  %303 = vset.pattern.permute.xlu0 0
  %304 = vperm.xlu0 %303, %v291
  %v305 = vpop.permute.xlu0 %304
  %vm307 = vcmask 261120
  %v309 = vsel %vm307, %v286, 0
  %v312 = vsel %vm307, %v287, 0
  %v315 = vsel %vm307, %v288, 0
  %317 = vmatprep.subr.mxu0 0.0
  %318 = vmatpush1.msra.mxu0 0.0
  %319 = vmatprep.subr.mxu0 0.0
  %320 = vmatpush1.msra.mxu0 0.0
  %321 = vmatprep.subr.mxu0 0.0
  %322 = vmatpush1.msra.mxu0 0.0
  %323 = vmatprep.subr.mxu0 0.0
  %324 = vmatpush1.msra.mxu0 0.0
  %325 = vmatprep.subr.mxu0 0.0
  %326 = vmatpush1.msra.mxu0 0.0
  %327 = vmatprep.subr.mxu0 0.0
  %328 = vmatpush1.msra.mxu0 0.0
  %329 = vmatprep.subr.mxu0 0.0
  %330 = vmatpush1.msra.mxu0 0.0
  %331 = vmatprep.subr.mxu0 0.0
  %332 = vmatpush1.msra.mxu0 0.0
  %333 = vmatprep.subr.mxu0 0.0
  %334 = vmatpush1.msra.mxu0 0.0
  %335 = vmatprep.subr.mxu0 0.0
  %336 = vmatpush1.msra.mxu0 0.0
  %337 = vmatprep.subr.mxu0 0.0
  %338 = vmatpush1.msra.mxu0 0.0
  %339 = vmatprep.subr.mxu0 0.0
  %340 = vmatpush1.msra.mxu0 0.0
  %341 = vmatprep.subr.mxu0 0.0
  %342 = vmatpush1.msra.mxu0 %v285
  %343 = vmatprep.subr.mxu0 0.0
  %344 = vmatpush1.msra.mxu0 %v284
  %345 = vmatprep.subr.mxu0 0.0
  %346 = vmatpush1.msra.mxu0 %v283
  %347 = vmatprep.subr.mxu0 0.0
  %348 = vmatpush1.msra.mxu0 %v282
  %349 = vmatprep.subr.mxu0 0.0
  %350 = vmatpush2.msra.mxu0 0.0
  %351 = vmatprep.subr.mxu0 0.0
  %352 = vmatpush2.msra.mxu0 0.0
  %353 = vmatprep.subr.mxu0 0.0
  %354 = vmatpush2.msra.mxu0 0.0
  %355 = vmatprep.subr.mxu0 0.0
  %356 = vmatpush2.msra.mxu0 0.0
  %357 = vmatprep.subr.mxu0 0.0
  %358 = vmatpush2.msra.mxu0 0.0
  %359 = vmatprep.subr.mxu0 0.0
  %360 = vmatpush2.msra.mxu0 0.0
  %361 = vmatprep.subr.mxu0 0.0
  %362 = vmatpush2.msra.mxu0 0.0
  %363 = vmatprep.subr.mxu0 0.0
  %364 = vmatpush2.msra.mxu0 0.0
  %365 = vmatprep.subr.mxu0 0.0
  %366 = vmatpush2.msra.mxu0 0.0
  %367 = vmatprep.subr.mxu0 0.0
  %368 = vmatpush2.msra.mxu0 0.0
  %369 = vmatprep.subr.mxu0 0.0
  %370 = vmatpush2.msra.mxu0 0.0
  %371 = vmatprep.subr.mxu0 0.0
  %372 = vmatpush2.msra.mxu0 0.0
  %373 = vmatprep.subr.mxu0 0.0
  %374 = vmatpush2.msra.mxu0 0.0
  %375 = vmatprep.subr.mxu0 0.0
  %376 = vmatpush2.msra.mxu0 0.0
  %377 = vmatprep.subr.mxu0 0.0
  %378 = vmatpush2.msra.mxu0 0.0
  %379 = vmatprep.subr.mxu0 0.0
  %380 = vmatpush2.msra.mxu0 0.0
  %381 = vmatprep.mubr.f32.mxu0 0.0
  %382 = vmatmul.mubr.f32.gmra.mxu0 %v309
  %v383 = vpop.f32.mrf.mxu0
  %v384 = vadd.f32 %v295, %v383
  %v385 = vpop.f32.mrf.mxu0
  %386 = vmatprep.mubr.f32.mxu0 0.0
  %387 = vmatmul.mubr.f32.gmra.mxu0 %v312
  %v388 = vpop.f32.mrf.mxu0
  %v389 = vadd.f32 %v300, %v388
  %v390 = vpop.f32.mrf.mxu0
  %391 = vmatprep.mubr.f32.mxu0 0.0
  %392 = vmatmul.mubr.f32.gmra.mxu0 %v315
  %v393 = vpop.f32.mrf.mxu0
  %v394 = vadd.f32 %v305, %v393
  %v395 = vpop.f32.mrf.mxu0
  %396 = vdwg.mxu0
  %v397 = vsub.f32 0.0, %v384
  %v398 = vsub.f32 0.0, %v389
  %v399 = vsub.f32 0.0, %v394
  %v400 = vmul.f32 %v397, 1.442695
  %v401 = vpow.pop %v400
  %v402 = vmul.f32 %v398, 1.442695
  %v403 = vpow.pop %v402
  %v404 = vmul.f32 %v399, 1.442695
  %v405 = vpow.pop %v404
  %v406 = vadd.f32 %v401, 1.0
  %v407 = vadd.f32 %v403, 1.0
  %v408 = vadd.f32 %v405, 1.0
  %v409 = vrcp.pop %v406
  %v410 = vrcp.pop %v407
  %v411 = vrcp.pop %v408
  %vm412 = vcmask 130048
  %413 = vst.msk [vmem:[%s7] sm:$0xff] %vm412, %v409
  %414 = vst.msk [vmem:[%s7 + $0x8] sm:$0xff] %vm412, %v410
  %415 = vst.msk [vmem:[%s7 + $0x10] sm:$0xff] %vm412, %v411
  // Predicated region
  $region30: #{tpu_custom_call.1} parent=0 // pred_check
    _
  $region31: #{tpu_custom_call.1} parent=0 // pred_check_branch
    %417 = sbr.rel (0) target = $region33
  $region32: #{tpu_custom_call.1} parent=0 // pred_region
    _
  $region33: #{tpu_custom_call.1} parent=0 // pred_fallthru
    _
  // Predicated region
  $region34: #{tpu_custom_call.1} parent=0 // pred_check
    _
  $region35: #{tpu_custom_call.1} parent=0 // pred_check_branch
    %419 = sbr.rel (0) target = $region37
  $region36: #{tpu_custom_call.1} parent=0 // pred_region
    _
  $region37: #{tpu_custom_call.1} parent=0 // pred_fallthru
    _

// kernel: tpu_custom_call.1
$region0: #{tpu_custom_call.1}
  #allocation0 [shape = 'u32[]', space=smem, size = 0x4, offset = 0x4, fixed_abs, tag = 'smem constant byte address 0x4 - core index']
  #allocation1 [shape = 'u32[144,128]{1,0:T(1,128)}', space=vmem, size = 0x12000, scoped, tag = 'internal scratch']
  %s0 = inlined_call_operand.vmem [shape: f32[12,16], index: 0, kind: input, shape index: {}]
  %s1 = inlined_call_operand.vmem [shape: s32[1,16], index: 1, kind: input, shape index: {}]
  %s2 = inlined_call_operand.vmem [shape: f32[32,10], index: 2, kind: input, shape index: {}]
  %s3 = inlined_call_operand.vmem [shape: f32[32,12], index: 3, kind: input, shape index: {}]
  %s4 = inlined_call_operand.vmem [shape: f32[32,1], index: 4, kind: input, shape index: {}]
  %s5 = inlined_call_operand.vmem [shape: f32[24,32], index: 5, kind: input, shape index: {}]
  %s6 = inlined_call_operand.vmem [shape: f32[24,1], index: 6, kind: input, shape index: {}]
  %s7 = inlined_call_operand.vmem [shape: f32[24,16], index: 7, kind: output, shape index: {}]
  %s8 = sld [smem:[#allocation0]]
  $region38: #{tpu_custom_call.1} parent=0
    _
  %s10 = ssub.s32 1, %s8
  %s11 = scalar_select 0, %s10, %s8
  // Predicated region
  $region2: #{tpu_custom_call.1} parent=0 // pred_check
    _
  $region3: #{tpu_custom_call.1} parent=0 // pred_check_branch
    %13 = sbr.rel (0) target = $region5
  $region4: #{tpu_custom_call.1} parent=0 // pred_region
    _
  $region5: #{tpu_custom_call.1} parent=0 // pred_fallthru
    _
  // Predicated region
  $region6: #{tpu_custom_call.1} parent=0 // pred_check
    _
  $region7: #{tpu_custom_call.1} parent=0 // pred_check_branch
    %15 = sbr.rel (0) target = $region9
  $region8: #{tpu_custom_call.1} parent=0 // pred_region
    _
  $region9: #{tpu_custom_call.1} parent=0 // pred_fallthru
    _
  // Predicated region
  $region10: #{tpu_custom_call.1} parent=0 // pred_check
    _
  $region11: #{tpu_custom_call.1} parent=0 // pred_check_branch
    %17 = sbr.rel (0) target = $region13
  $region12: #{tpu_custom_call.1} parent=0 // pred_region
    _
  $region13: #{tpu_custom_call.1} parent=0 // pred_fallthru
    _
  // Predicated region
  $region14: #{tpu_custom_call.1} parent=0 // pred_check
    _
  $region15: #{tpu_custom_call.1} parent=0 // pred_check_branch
    %19 = sbr.rel (0) target = $region17
  $region16: #{tpu_custom_call.1} parent=0 // pred_region
    _
  $region17: #{tpu_custom_call.1} parent=0 // pred_fallthru
    _
  // Predicated region
  $region18: #{tpu_custom_call.1} parent=0 // pred_check
    _
  $region19: #{tpu_custom_call.1} parent=0 // pred_check_branch
    %21 = sbr.rel (0) target = $region21
  $region20: #{tpu_custom_call.1} parent=0 // pred_region
    _
  $region21: #{tpu_custom_call.1} parent=0 // pred_fallthru
    _
  // Predicated region
  $region22: #{tpu_custom_call.1} parent=0 // pred_check
    _
  $region23: #{tpu_custom_call.1} parent=0 // pred_check_branch
    %23 = sbr.rel (0) target = $region25
  $region24: #{tpu_custom_call.1} parent=0 // pred_region
    _
  $region25: #{tpu_custom_call.1} parent=0 // pred_fallthru
    _
  // Predicated region
  $region26: #{tpu_custom_call.1} parent=0 // pred_check
    _
  $region27: #{tpu_custom_call.1} parent=0 // pred_check_branch
    %25 = sbr.rel (0) target = $region29
  $region28: #{tpu_custom_call.1} parent=0 // pred_region
    _
  $region29: #{tpu_custom_call.1} parent=0 // pred_fallthru
    _
  %v26 = vld [vmem:[%s0] sm:$0xff]
  %v27 = vld [vmem:[%s0 + $0x8] sm:$0xf]
  %v28 = vld [vmem:[%s1] sm:$0x1]
  %v29 = vld [vmem:[%s2] sm:$0xff]
  %v30 = vld [vmem:[%s2 + $0x8] sm:$0xff]
  %v31 = vld [vmem:[%s2 + $0x10] sm:$0xff]
  %v32 = vld [vmem:[%s2 + $0x18] sm:$0xff]
  %v33 = vlaneseq
  %v34 = vshrl.u32 %v33, 7
  %v35 = vadd.s32 %v34, 8
  %v36 = vlaneseq
  %v37 = vshrl.u32 %v36, 7
  %v38 = vsub.s32 0, %v37
  %v39 = vrot.slane %v28, %v38
  %vm40 = vcmp.eq.s32.totalorder %v34, %v39
  %vm41 = vcmp.eq.s32.totalorder %v35, %v39
  %v42 = vsel %vm40, 1, 0
  %v43 = vsel %vm41, 1, 0
  %v44 = vcvt.s32.f32 %v42
  %v45 = vcvt.s32.f32 %v43
  %vm46 = vcmask 80896
  %v48 = vsel %vm46, %v29, 0
  %v51 = vsel %vm46, %v30, 0
  %v54 = vsel %vm46, %v31, 0
  %v57 = vsel %vm46, %v32, 0
  %vm59 = vcmask 1041408
  %v61 = vsel %vm59, %v45, 0
  %63 = vmatprep.subr.mxu0 0.0
  %64 = vmatpush1.msra.mxu0 0.0
  %65 = vmatprep.subr.mxu0 0.0
  %66 = vmatpush1.msra.mxu0 0.0
  %67 = vmatprep.subr.mxu0 0.0
  %68 = vmatpush1.msra.mxu0 0.0
  %69 = vmatprep.subr.mxu0 0.0
  %70 = vmatpush1.msra.mxu0 0.0
  %71 = vmatprep.subr.mxu0 0.0
  %72 = vmatpush1.msra.mxu0 0.0
  %73 = vmatprep.subr.mxu0 0.0
  %74 = vmatpush1.msra.mxu0 0.0
  %75 = vmatprep.subr.mxu0 0.0
  %76 = vmatpush1.msra.mxu0 0.0
  %77 = vmatprep.subr.mxu0 0.0
  %78 = vmatpush1.msra.mxu0 0.0
  %79 = vmatprep.subr.mxu0 0.0
  %80 = vmatpush1.msra.mxu0 0.0
  %81 = vmatprep.subr.mxu0 0.0
  %82 = vmatpush1.msra.mxu0 0.0
  %83 = vmatprep.subr.mxu0 0.0
  %84 = vmatpush1.msra.mxu0 0.0
  %85 = vmatprep.subr.mxu0 0.0
  %86 = vmatpush1.msra.mxu0 0.0
  %87 = vmatprep.subr.mxu0 0.0
  %88 = vmatpush1.msra.mxu0 0.0
  %89 = vmatprep.subr.mxu0 0.0
  %90 = vmatpush1.msra.mxu0 0.0
  %91 = vmatprep.subr.mxu0 0.0
  %92 = vmatpush1.msra.mxu0 %v61
  %93 = vmatprep.subr.mxu0 0.0
  %94 = vmatpush1.msra.mxu0 %v44
  %95 = vmatprep.subr.mxu0 0.0
  %96 = vmatpush2.msra.mxu0 0.0
  %97 = vmatprep.subr.mxu0 0.0
  %98 = vmatpush2.msra.mxu0 0.0
  %99 = vmatprep.subr.mxu0 0.0
  %100 = vmatpush2.msra.mxu0 0.0
  %101 = vmatprep.subr.mxu0 0.0
  %102 = vmatpush2.msra.mxu0 0.0
  %103 = vmatprep.subr.mxu0 0.0
  %104 = vmatpush2.msra.mxu0 0.0
  %105 = vmatprep.subr.mxu0 0.0
  %106 = vmatpush2.msra.mxu0 0.0
  %107 = vmatprep.subr.mxu0 0.0
  %108 = vmatpush2.msra.mxu0 0.0
  %109 = vmatprep.subr.mxu0 0.0
  %110 = vmatpush2.msra.mxu0 0.0
  %111 = vmatprep.subr.mxu0 0.0
  %112 = vmatpush2.msra.mxu0 0.0
  %113 = vmatprep.subr.mxu0 0.0
  %114 = vmatpush2.msra.mxu0 0.0
  %115 = vmatprep.subr.mxu0 0.0
  %116 = vmatpush2.msra.mxu0 0.0
  %117 = vmatprep.subr.mxu0 0.0
  %118 = vmatpush2.msra.mxu0 0.0
  %119 = vmatprep.subr.mxu0 0.0
  %120 = vmatpush2.msra.mxu0 0.0
  %121 = vmatprep.subr.mxu0 0.0
  %122 = vmatpush2.msra.mxu0 0.0
  %123 = vmatprep.subr.mxu0 0.0
  %124 = vmatpush2.msra.mxu0 0.0
  %125 = vmatprep.subr.mxu0 0.0
  %126 = vmatpush2.msra.mxu0 0.0
  %127 = vmatprep.mubr.f32.mxu0 0.0
  %128 = vmatmul.mubr.f32.gmra.mxu0 %v48
  %v129 = vpop.f32.mrf.mxu0
  %v130 = vadd.f32 0.0, %v129
  %v131 = vpop.f32.mrf.mxu0
  %132 = vmatprep.mubr.f32.mxu0 0.0
  %133 = vmatmul.mubr.f32.gmra.mxu0 %v51
  %v134 = vpop.f32.mrf.mxu0
  %v135 = vadd.f32 0.0, %v134
  %v136 = vpop.f32.mrf.mxu0
  %137 = vmatprep.mubr.f32.mxu0 0.0
  %138 = vmatmul.mubr.f32.gmra.mxu0 %v54
  %v139 = vpop.f32.mrf.mxu0
  %v140 = vadd.f32 0.0, %v139
  %v141 = vpop.f32.mrf.mxu0
  %142 = vmatprep.mubr.f32.mxu0 0.0
  %143 = vmatmul.mubr.f32.gmra.mxu0 %v57
  %v144 = vpop.f32.mrf.mxu0
  %v145 = vadd.f32 0.0, %v144
  %v146 = vpop.f32.mrf.mxu0
  %147 = vdwg.mxu0
  %v148 = vld [vmem:[%s3] sm:$0xff]
  %v149 = vld [vmem:[%s3 + $0x8] sm:$0xff]
  %v150 = vld [vmem:[%s3 + $0x10] sm:$0xff]
  %v151 = vld [vmem:[%s3 + $0x18] sm:$0xff]
  %v152 = vld [vmem:[%s4] sm:$0xff]
  %v153 = vld [vmem:[%s4 + $0x8] sm:$0xff]
  %v154 = vld [vmem:[%s4 + $0x10] sm:$0xff]
  %v155 = vld [vmem:[%s4 + $0x18] sm:$0xff]
  %157 = vset.pattern.permute.xlu0 0
  %158 = vperm.xlu0 %157, %v152
  %v159 = vpop.permute.xlu0 %158
  %162 = vset.pattern.permute.xlu0 0
  %163 = vperm.xlu0 %162, %v153
  %v164 = vpop.permute.xlu0 %163
  %167 = vset.pattern.permute.xlu0 0
  %168 = vperm.xlu0 %167, %v154
  %v169 = vpop.permute.xlu0 %168
  %172 = vset.pattern.permute.xlu0 0
  %173 = vperm.xlu0 %172, %v155
  %v174 = vpop.permute.xlu0 %173
  %vm176 = vcmask 97280
  %v178 = vsel %vm176, %v148, 0
  %v181 = vsel %vm176, %v149, 0
  %v184 = vsel %vm176, %v150, 0
  %v187 = vsel %vm176, %v151, 0
  %vm189 = vcmask 1043456
  %v191 = vsel %vm189, %v27, 0
  %193 = vmatprep.subr.mxu0 0.0
  %194 = vmatpush1.msra.mxu0 0.0
  %195 = vmatprep.subr.mxu0 0.0
  %196 = vmatpush1.msra.mxu0 0.0
  %197 = vmatprep.subr.mxu0 0.0
  %198 = vmatpush1.msra.mxu0 0.0
  %199 = vmatprep.subr.mxu0 0.0
  %200 = vmatpush1.msra.mxu0 0.0
  %201 = vmatprep.subr.mxu0 0.0
  %202 = vmatpush1.msra.mxu0 0.0
  %203 = vmatprep.subr.mxu0 0.0
  %204 = vmatpush1.msra.mxu0 0.0
  %205 = vmatprep.subr.mxu0 0.0
  %206 = vmatpush1.msra.mxu0 0.0
  %207 = vmatprep.subr.mxu0 0.0
  %208 = vmatpush1.msra.mxu0 0.0
  %209 = vmatprep.subr.mxu0 0.0
  %210 = vmatpush1.msra.mxu0 0.0
  %211 = vmatprep.subr.mxu0 0.0
  %212 = vmatpush1.msra.mxu0 0.0
  %213 = vmatprep.subr.mxu0 0.0
  %214 = vmatpush1.msra.mxu0 0.0
  %215 = vmatprep.subr.mxu0 0.0
  %216 = vmatpush1.msra.mxu0 0.0
  %217 = vmatprep.subr.mxu0 0.0
  %218 = vmatpush1.msra.mxu0 0.0
  %219 = vmatprep.subr.mxu0 0.0
  %220 = vmatpush1.msra.mxu0 0.0
  %221 = vmatprep.subr.mxu0 0.0
  %222 = vmatpush1.msra.mxu0 %v191
  %223 = vmatprep.subr.mxu0 0.0
  %224 = vmatpush1.msra.mxu0 %v26
  %225 = vmatprep.subr.mxu0 0.0
  %226 = vmatpush2.msra.mxu0 0.0
  %227 = vmatprep.subr.mxu0 0.0
  %228 = vmatpush2.msra.mxu0 0.0
  %229 = vmatprep.subr.mxu0 0.0
  %230 = vmatpush2.msra.mxu0 0.0
  %231 = vmatprep.subr.mxu0 0.0
  %232 = vmatpush2.msra.mxu0 0.0
  %233 = vmatprep.subr.mxu0 0.0
  %234 = vmatpush2.msra.mxu0 0.0
  %235 = vmatprep.subr.mxu0 0.0
  %236 = vmatpush2.msra.mxu0 0.0
  %237 = vmatprep.subr.mxu0 0.0
  %238 = vmatpush2.msra.mxu0 0.0
  %239 = vmatprep.subr.mxu0 0.0
  %240 = vmatpush2.msra.mxu0 0.0
  %241 = vmatprep.subr.mxu0 0.0
  %242 = vmatpush2.msra.mxu0 0.0
  %243 = vmatprep.subr.mxu0 0.0
  %244 = vmatpush2.msra.mxu0 0.0
  %245 = vmatprep.subr.mxu0 0.0
  %246 = vmatpush2.msra.mxu0 0.0
  %247 = vmatprep.subr.mxu0 0.0
  %248 = vmatpush2.msra.mxu0 0.0
  %249 = vmatprep.subr.mxu0 0.0
  %250 = vmatpush2.msra.mxu0 0.0
  %251 = vmatprep.subr.mxu0 0.0
  %252 = vmatpush2.msra.mxu0 0.0
  %253 = vmatprep.subr.mxu0 0.0
  %254 = vmatpush2.msra.mxu0 0.0
  %255 = vmatprep.subr.mxu0 0.0
  %256 = vmatpush2.msra.mxu0 0.0
  %257 = vmatprep.mubr.f32.mxu0 0.0
  %258 = vmatmul.mubr.f32.gmra.mxu0 %v178
  %v259 = vpop.f32.mrf.mxu0
  %v260 = vadd.f32 %v159, %v259
  %v261 = vpop.f32.mrf.mxu0
  %262 = vmatprep.mubr.f32.mxu0 0.0
  %263 = vmatmul.mubr.f32.gmra.mxu0 %v181
  %v264 = vpop.f32.mrf.mxu0
  %v265 = vadd.f32 %v164, %v264
  %v266 = vpop.f32.mrf.mxu0
  %267 = vmatprep.mubr.f32.mxu0 0.0
  %268 = vmatmul.mubr.f32.gmra.mxu0 %v184
  %v269 = vpop.f32.mrf.mxu0
  %v270 = vadd.f32 %v169, %v269
  %v271 = vpop.f32.mrf.mxu0
  %272 = vmatprep.mubr.f32.mxu0 0.0
  %273 = vmatmul.mubr.f32.gmra.mxu0 %v187
  %v274 = vpop.f32.mrf.mxu0
  %v275 = vadd.f32 %v174, %v274
  %v276 = vpop.f32.mrf.mxu0
  %277 = vdwg.mxu0
  %v278 = vadd.f32 %v260, %v130
  %v279 = vadd.f32 %v265, %v135
  %v280 = vadd.f32 %v270, %v140
  %v281 = vadd.f32 %v275, %v145
  %v282 = vmax.f32 %v278, 0.0
  %v283 = vmax.f32 %v279, 0.0
  %v284 = vmax.f32 %v280, 0.0
  %v285 = vmax.f32 %v281, 0.0
  %v286 = vld [vmem:[%s5] sm:$0xff]
  %v287 = vld [vmem:[%s5 + $0x8] sm:$0xff]
  %v288 = vld [vmem:[%s5 + $0x10] sm:$0xff]
  %v289 = vld [vmem:[%s6] sm:$0xff]
  %v290 = vld [vmem:[%s6 + $0x8] sm:$0xff]
  %v291 = vld [vmem:[%s6 + $0x10] sm:$0xff]
  %293 = vset.pattern.permute.xlu0 0
  %294 = vperm.xlu0 %293, %v289
  %v295 = vpop.permute.xlu0 %294
  %298 = vset.pattern.permute.xlu0 0
  %299 = vperm.xlu0 %298, %v290
  %v300 = vpop.permute.xlu0 %299
  %303 = vset.pattern.permute.xlu0 0
  %304 = vperm.xlu0 %303, %v291
  %v305 = vpop.permute.xlu0 %304
  %vm307 = vcmask 261120
  %v309 = vsel %vm307, %v286, 0
  %v312 = vsel %vm307, %v287, 0
  %v315 = vsel %vm307, %v288, 0
  %317 = vmatprep.subr.mxu0 0.0
  %318 = vmatpush1.msra.mxu0 0.0
  %319 = vmatprep.subr.mxu0 0.0
  %320 = vmatpush1.msra.mxu0 0.0
  %321 = vmatprep.subr.mxu0 0.0
  %322 = vmatpush1.msra.mxu0 0.0
  %323 = vmatprep.subr.mxu0 0.0
  %324 = vmatpush1.msra.mxu0 0.0
  %325 = vmatprep.subr.mxu0 0.0
  %326 = vmatpush1.msra.mxu0 0.0
  %327 = vmatprep.subr.mxu0 0.0
  %328 = vmatpush1.msra.mxu0 0.0
  %329 = vmatprep.subr.mxu0 0.0
  %330 = vmatpush1.msra.mxu0 0.0
  %331 = vmatprep.subr.mxu0 0.0
  %332 = vmatpush1.msra.mxu0 0.0
  %333 = vmatprep.subr.mxu0 0.0
  %334 = vmatpush1.msra.mxu0 0.0
  %335 = vmatprep.subr.mxu0 0.0
  %336 = vmatpush1.msra.mxu0 0.0
  %337 = vmatprep.subr.mxu0 0.0
  %338 = vmatpush1.msra.mxu0 0.0
  %339 = vmatprep.subr.mxu0 0.0
  %340 = vmatpush1.msra.mxu0 0.0
  %341 = vmatprep.subr.mxu0 0.0
  %342 = vmatpush1.msra.mxu0 %v285
  %343 = vmatprep.subr.mxu0 0.0
  %344 = vmatpush1.msra.mxu0 %v284
  %345 = vmatprep.subr.mxu0 0.0
  %346 = vmatpush1.msra.mxu0 %v283
  %347 = vmatprep.subr.mxu0 0.0
  %348 = vmatpush1.msra.mxu0 %v282
  %349 = vmatprep.subr.mxu0 0.0
  %350 = vmatpush2.msra.mxu0 0.0
  %351 = vmatprep.subr.mxu0 0.0
  %352 = vmatpush2.msra.mxu0 0.0
  %353 = vmatprep.subr.mxu0 0.0
  %354 = vmatpush2.msra.mxu0 0.0
  %355 = vmatprep.subr.mxu0 0.0
  %356 = vmatpush2.msra.mxu0 0.0
  %357 = vmatprep.subr.mxu0 0.0
  %358 = vmatpush2.msra.mxu0 0.0
  %359 = vmatprep.subr.mxu0 0.0
  %360 = vmatpush2.msra.mxu0 0.0
  %361 = vmatprep.subr.mxu0 0.0
  %362 = vmatpush2.msra.mxu0 0.0
  %363 = vmatprep.subr.mxu0 0.0
  %364 = vmatpush2.msra.mxu0 0.0
  %365 = vmatprep.subr.mxu0 0.0
  %366 = vmatpush2.msra.mxu0 0.0
  %367 = vmatprep.subr.mxu0 0.0
  %368 = vmatpush2.msra.mxu0 0.0
  %369 = vmatprep.subr.mxu0 0.0
  %370 = vmatpush2.msra.mxu0 0.0
  %371 = vmatprep.subr.mxu0 0.0
  %372 = vmatpush2.msra.mxu0 0.0
  %373 = vmatprep.subr.mxu0 0.0
  %374 = vmatpush2.msra.mxu0 0.0
  %375 = vmatprep.subr.mxu0 0.0
  %376 = vmatpush2.msra.mxu0 0.0
  %377 = vmatprep.subr.mxu0 0.0
  %378 = vmatpush2.msra.mxu0 0.0
  %379 = vmatprep.subr.mxu0 0.0
  %380 = vmatpush2.msra.mxu0 0.0
  %381 = vmatprep.mubr.f32.mxu0 0.0
  %382 = vmatmul.mubr.f32.gmra.mxu0 %v309
  %v383 = vpop.f32.mrf.mxu0
  %v384 = vadd.f32 %v295, %v383
  %v385 = vpop.f32.mrf.mxu0
  %386 = vmatprep.mubr.f32.mxu0 0.0
  %387 = vmatmul.mubr.f32.gmra.mxu0 %v312
  %v388 = vpop.f32.mrf.mxu0
  %v389 = vadd.f32 %v300, %v388
  %v390 = vpop.f32.mrf.mxu0
  %391 = vmatprep.mubr.f32.mxu0 0.0
  %392 = vmatmul.mubr.f32.gmra.mxu0 %v315
  %v393 = vpop.f32.mrf.mxu0
  %v394 = vadd.f32 %v305, %v393
  %v395 = vpop.f32.mrf.mxu0
  %396 = vdwg.mxu0
  %v397 = vsub.f32 0.0, %v384
  %v398 = vsub.f32 0.0, %v389
  %v399 = vsub.f32 0.0, %v394
  %v400 = vmul.f32 %v397, 1.442695
  %v401 = vpow.pop %v400
  %v402 = vmul.f32 %v398, 1.442695
  %v403 = vpow.pop %v402
  %v404 = vmul.f32 %v399, 1.442695
  %v405 = vpow.pop %v404
  %v406 = vadd.f32 %v401, 1.0
  %v407 = vadd.f32 %v403, 1.0
  %v408 = vadd.f32 %v405, 1.0
  %v409 = vrcp.pop %v406
  %v410 = vrcp.pop %v407
  %v411 = vrcp.pop %v408
  %vm412 = vcmask 130048
  %413 = vst.msk [vmem:[%s7] sm:$0xff] %vm412, %v409
  %414 = vst.msk [vmem:[%s7 + $0x8] sm:$0xff] %vm412, %v410
  %415 = vst.msk [vmem:[%s7 + $0x10] sm:$0xff] %vm412, %v411
  // Predicated region
  $region30: #{tpu_custom_call.1} parent=0 // pred_check
    _
  $region31: #{tpu_custom_call.1} parent=0 // pred_check_branch
    %417 = sbr.rel (0) target = $region33
  $region32: #{tpu_custom_call.1} parent=0 // pred_region
    _
  $region33: #{tpu_custom_call.1} parent=0 // pred_fallthru
    _
  // Predicated region
  $region34: #{tpu_custom_call.1} parent=0 // pred_check
    _
  $region35: #{tpu_custom_call.1} parent=0 // pred_check_branch
    %419 = sbr.rel (0) target = $region37
  $region36: #{tpu_custom_call.1} parent=0 // pred_region
    _
  $region37: #{tpu_custom_call.1} parent=0 // pred_fallthru
    _

</llo_original>
